<compile_context>
chip_gen: v7x
topology: tpu7x:2x2x1
jax: 0.10.0
libtpu: 0.0.40
codegen_flags: <defaults>
</compile_context>

<pallas_src>
import functools

import jax
import jax.numpy as jnp
from jax import lax
from jax.experimental import pallas as pl
from jax.experimental.pallas import tpu as pltpu

SCALE = 0.4            # RBF length_scale
EPSILON = 0.1          # adjacency threshold
_NEG_INV_2S2 = -1.0 / (2.0 * SCALE * SCALE)
_LANE = 128            # pad feature widths to multiples of this


def _round_up(n, m):
    return ((n + m - 1) // m) * m


def _vmem_limit(est_bytes):
    # Size the scoped-VMEM limit to the actual footprint (+8 MiB headroom).
    # Capped at 64 MiB so the request is satisfiable on every chip (v7x has
    # 64 MiB physical per TC; v5e/v6e could go higher if ever needed).
    return int(min(max(est_bytes + (8 << 20), 32 << 20), 64 << 20))


# ---------------------------------------------------------------------------
# In-kernel building blocks
# ---------------------------------------------------------------------------
def _thresholded_rbf(x_rows, x_all, n_valid):
    """Thresholded (un-normalized) RBF adjacency slab A[rows, :]."""
    sq_r = jnp.sum(x_rows * x_rows, axis=1, keepdims=True)            # (R, 1)
    sq_c = jnp.sum(x_all * x_all, axis=1, keepdims=True)              # (C, 1)
    # Contract the feature axis of both operands directly (trans_b on MXU):
    # avoids materializing an explicit XLU transpose of x_all.
    gram = lax.dot_general(
        x_rows, x_all,
        dimension_numbers=(((1,), (1,)), ((), ())),
        preferred_element_type=jnp.float32)                           # (R, C)
    d2 = jnp.maximum(sq_r + sq_c.T - 2.0 * gram, 0.0)                 # clamp fp cancel
    a = jnp.exp(d2 * _NEG_INV_2S2)                                    # EUP, > 0
    a = jnp.where(a < EPSILON, 0.0, a)                                # threshold
    if n_valid is not None and n_valid < x_all.shape[0]:
        # Zero out padded columns: a zero-padded row x_j = 0 would give
        # a_ij = exp(-|x_i|^2/(2 s^2)) which can pass the threshold and
        # corrupt real degrees.
        col = lax.broadcasted_iota(jnp.int32, a.shape, 1)
        a = jnp.where(col < n_valid, a, 0.0)
    return a


def _fc_stack(feat, wrefs, n_fc, matmul_dtype):
    idx = 0
    for li in range(n_fc):
        w = wrefs[idx][...]
        b = wrefs[idx + 1][...]                                       # (1, out_pad)
        idx += 2
        feat = jnp.dot(feat.astype(matmul_dtype), w.astype(matmul_dtype),
                       preferred_element_type=jnp.float32) + b
        if li < n_fc - 1:
            feat = jnp.maximum(feat, 0.0)
    return feat


# ---------------------------------------------------------------------------
# Fused kernel (small/medium N): adjacency + all gc layers + all fc layers.
# refs = (x, gc_w..., [fc_w, fc_b]..., out)
# ---------------------------------------------------------------------------
def _fused_gcn_kernel(*refs, n_gc, n_fc, matmul_dtype):
    x_ref, out_ref = refs[0], refs[-1]
    wrefs = refs[1:-1]

    x = x_ref[...]                                                    # (N, Dp) f32
    a = _thresholded_rbf(x, x, None)                                  # (N, N)
    dinv = lax.rsqrt(jnp.sum(a, axis=1, keepdims=True))               # (N, 1)

    if n_gc == 1:
        # Fold D^-1/2 A D^-1/2 into the propagation matmul.
        w = wrefs[0][...]
        xw = jnp.dot(x, w, preferred_element_type=jnp.float32)
        xw_s = (dinv * xw).astype(matmul_dtype)
        prop = jnp.dot(a.astype(matmul_dtype), xw_s,
                       preferred_element_type=jnp.float32)
        feat = jnp.maximum(dinv * prop, 0.0)
        idx = 1
    else:
        # Normalized A is reused across layers -> precompute it once.
        a = ((dinv * a) * dinv.T).astype(matmul_dtype)
        feat = x
        idx = 0
        for _ in range(n_gc):
            w = wrefs[idx][...]
            idx += 1
            xw = jnp.dot(feat, w, preferred_element_type=jnp.float32)
            feat = jnp.maximum(
                jnp.dot(a, xw.astype(matmul_dtype),
                        preferred_element_type=jnp.float32), 0.0)

    out_ref[...] = _fc_stack(feat, wrefs[idx:], n_fc, matmul_dtype)


# ---------------------------------------------------------------------------
# Row-tiled kernels (large N, n_gc == 1): two passes over the adjacency.
# ---------------------------------------------------------------------------
def _degree_kernel(xb_ref, xf_ref, deg_ref, *, n_valid):
    a = _thresholded_rbf(xb_ref[...], xf_ref[...], n_valid)           # (tm, Np)
    deg_ref[...] = jnp.sum(a, axis=1, keepdims=True)                  # (tm, 1)


def _propagate_kernel(xb_ref, xf_ref, deg_ref, xw_ref, *wrefs_out,
                      n_fc, n_valid, matmul_dtype):
    out_ref = wrefs_out[-1]
    wrefs = wrefs_out[:-1]

    a = _thresholded_rbf(xb_ref[...], xf_ref[...], n_valid)           # (tm, Np)
    tm, np_rows = a.shape

    dinv_blk = lax.rsqrt(jnp.sum(a, axis=1, keepdims=True))           # (tm, 1)
    dinv_all = lax.rsqrt(deg_ref[...])                                # (Np, 1)

    xw_s = dinv_all * xw_ref[...]                                     # (Np, H)
    if n_valid < np_rows:
        # Padded rows may have degree 0 -> dinv = inf; kill inf*0 -> NaN.
        rvalid = lax.broadcasted_iota(jnp.int32, (np_rows, 1), 0) < n_valid
        xw_s = jnp.where(rvalid, xw_s, 0.0)

    prop = jnp.dot(a.astype(matmul_dtype), xw_s.astype(matmul_dtype),
                   preferred_element_type=jnp.float32)
    feat = jnp.maximum(dinv_blk * prop, 0.0)
    if n_valid < np_rows:
        gid = (pl.program_id(0) * tm
               + lax.broadcasted_iota(jnp.int32, (tm, 1), 0))
        feat = jnp.where(gid < n_valid, feat, 0.0)                    # padded rows -> 0

    out_ref[...] = _fc_stack(feat, wrefs, n_fc, matmul_dtype)


# ---------------------------------------------------------------------------
# One-time parameter preparation: lane-dense zero padding of weights/biases.
# ---------------------------------------------------------------------------
def prepare_params(params):
    gc_ws = [jnp.asarray(w, jnp.float32) for w in params["gc_weights"]]
    fc_ls = [(jnp.asarray(w, jnp.float32), jnp.asarray(b, jnp.float32))
             for (w, b) in params["fc_layers"]]
    dim_X = gc_ws[0].shape[0]
    dim_y = fc_ls[-1][0].shape[1]
    dp = _round_up(dim_X, _LANE)

    gc_pad, fc_pad = [], []
    in_dim = dp
    for w in gc_ws:
        out_dim = _round_up(w.shape[1], _LANE)
        gc_pad.append(jnp.pad(w, ((0, in_dim - w.shape[0]),
                                  (0, out_dim - w.shape[1]))))
        in_dim = out_dim
    for w, b in fc_ls:
        out_dim = _round_up(w.shape[1], _LANE)
        fc_pad.append(jnp.pad(w, ((0, in_dim - w.shape[0]),
                                  (0, out_dim - w.shape[1]))))
        fc_pad.append(jnp.pad(b.reshape(1, -1),
                              ((0, 0), (0, out_dim - b.shape[0]))))
        in_dim = out_dim

    return dict(dim_X=dim_X, dim_X_pad=dp, dim_y=dim_y, out_pad=in_dim,
                n_gc=len(gc_ws), n_fc=len(fc_ls), gc_pad=gc_pad, fc_pad=fc_pad)


# ---------------------------------------------------------------------------
# Forward wrapper
# ---------------------------------------------------------------------------
def gcn_forward(x, prep, *, matmul_dtype=jnp.float32, row_tile=512,
                force_tiled=False):
    """GCN.forward (mode='rbf') as Pallas TPU kernels.

    matmul_dtype: set to jnp.bfloat16 on v6e/v7x for ~2-3x MXU throughput on
    the dominant A@XW / FC matmuls (f32 accumulation); keep f32 on v5e or
    when exact f32 parity is required.
    """
    n, d = x.shape
    dp = prep["dim_X_pad"]
    n_gc, n_fc = prep["n_gc"], prep["n_fc"]
    out_pad, dim_y = prep["out_pad"], prep["dim_y"]
    weights = list(prep["gc_pad"]) + list(prep["fc_pad"])
    w_bytes = int(sum(int(w.size) for w in weights)) * 4

    xp = jnp.pad(x.astype(jnp.float32), ((0, 0), (0, dp - d)))

    # Row-tile when the fully resident N×N adjacency (+ gram/d2 temporaries,
    # ~3*N^2*4 B) would stress VMEM.  Only n_gc == 1 tiles cleanly.
    adj_bytes = 3 * n * n * 4
    use_tiled = (n_gc == 1) and (force_tiled or adj_bytes > (24 << 20))

    vmem_full = pl.BlockSpec(memory_space=pltpu.MemorySpace.VMEM)

    if not use_tiled:
        widths = [dp] + [int(w.shape[1]) for w in prep["gc_pad"]]
        flops = 2 * n * n * dp
        cur = dp
        for w in prep["gc_pad"]:
            flops += 2 * n * cur * int(w.shape[1]) + 2 * n * n * int(w.shape[1])
            cur = int(w.shape[1])
        for w in prep["fc_pad"][0::2]:
            flops += 2 * n * cur * int(w.shape[1])
            cur = int(w.shape[1])
        io_bytes = 4 * (n * dp + n * out_pad) + w_bytes
        est = adj_bytes + io_bytes + 4 * 4 * n * max(widths + [out_pad])

        out = pl.pallas_call(
            functools.partial(_fused_gcn_kernel, n_gc=n_gc, n_fc=n_fc,
                              matmul_dtype=matmul_dtype),
            out_shape=jax.ShapeDtypeStruct((n, out_pad), jnp.float32),
            in_specs=[vmem_full] * (1 + len(weights)),
            out_specs=vmem_full,
            compiler_params=pltpu.CompilerParams(
                vmem_limit_bytes=_vmem_limit(est)),
            cost_estimate=pl.CostEstimate(
                flops=int(flops), transcendentals=int(n * n),
                bytes_accessed=int(io_bytes)),
        )(xp, *weights)
        return out[:, :dim_y]

    # ------------------- row-tiled path (n_gc == 1) -------------------
    tm = max(128, min(int(row_tile), _round_up(n, 128)))
    n_pad = _round_up(n, tm)
    nb = n_pad // tm
    xr = jnp.pad(xp, ((0, n_pad - n), (0, 0)))                        # zero rows

    w_gc = prep["gc_pad"][0]
    h_pad = int(w_gc.shape[1])
    # XW is N*Dp*H — tiny next to the N^2 adjacency work; compute it once in
    # plain XLA (HIGHEST to preserve f32 parity) rather than per row block.
    xw = jnp.dot(xr, w_gc, precision=jax.lax.Precision.HIGHEST)

    par = pltpu.CompilerParams(
        dimension_semantics=("parallel",),   # shards row blocks across TCs (v7x)
        vmem_limit_bytes=_vmem_limit(
            4 * (2 * n_pad * dp + 2 * tm * dp + 2 * n_pad * h_pad
                 + 3 * tm * n_pad + 2 * tm * out_pad) + w_bytes))

    deg = pl.pallas_call(
        functools.partial(_degree_kernel, n_valid=n),
        grid=(nb,),
        in_specs=[pl.BlockSpec((tm, dp), lambda i: (i, 0)),
                  pl.BlockSpec((n_pad, dp), lambda i: (0, 0))],
        out_specs=pl.BlockSpec((tm, 1), lambda i: (i, 0)),
        out_shape=jax.ShapeDtypeStruct((n_pad, 1), jnp.float32),
        compiler_params=par,
        cost_estimate=pl.CostEstimate(
            flops=int(2 * n_pad * n_pad * dp),
            transcendentals=int(n_pad * n_pad),
            bytes_accessed=int(4 * (n_pad * dp * (nb + 1) + n_pad))),
    )(xr, xr)

    fc_w = prep["fc_pad"]
    fc_specs = [pl.BlockSpec(tuple(w.shape), lambda i: (0, 0)) for w in fc_w]
    fc_flops = 0
    cur = h_pad
    for w in fc_w[0::2]:
        fc_flops += 2 * n_pad * cur * int(w.shape[1])
        cur = int(w.shape[1])

    out = pl.pallas_call(
        functools.partial(_propagate_kernel, n_fc=n_fc, n_valid=n,
                          matmul_dtype=matmul_dtype),
        grid=(nb,),
        in_specs=[pl.BlockSpec((tm, dp), lambda i: (i, 0)),
                  pl.BlockSpec((n_pad, dp), lambda i: (0, 0)),
                  pl.BlockSpec((n_pad, 1), lambda i: (0, 0)),
                  pl.BlockSpec((n_pad, h_pad), lambda i: (0, 0))] + fc_specs,
        out_specs=pl.BlockSpec((tm, out_pad), lambda i: (i, 0)),
        out_shape=jax.ShapeDtypeStruct((n_pad, out_pad), jnp.float32),
        compiler_params=par,
        cost_estimate=pl.CostEstimate(
            flops=int(2 * n_pad * n_pad * (dp + h_pad) + fc_flops),
            transcendentals=int(n_pad * n_pad),
            bytes_accessed=int(4 * (n_pad * dp * (nb + 1)
                                    + n_pad * (1 + h_pad) * nb
                                    + n_pad * out_pad) + w_bytes)),
    )(xr, xr, deg, xw, *fc_w)

    return out[:n, :dim_y]


# ---------------------------------------------------------------------------
# Pure-jnp reference (same math, no padding) for correctness checks.
# ---------------------------------------------------------------------------
def gcn_reference(x, params):
    hp = jax.lax.Precision.HIGHEST
    sq = jnp.sum(x * x, axis=1, keepdims=True)
    d2 = jnp.maximum(sq + sq.T - 2.0 * jnp.dot(x, x.T, precision=hp), 0.0)
    a = jnp.exp(d2 * _NEG_INV_2S2)
    a = jnp.where(a < EPSILON, 0.0, a)
    dinv = 1.0 / jnp.sqrt(jnp.sum(a, axis=1, keepdims=True))
    a = dinv * a * dinv.T
    feat = x
    for w in params["gc_weights"]:
        feat = jnp.maximum(jnp.dot(a, jnp.dot(feat, w, precision=hp),
                                   precision=hp), 0.0)
    fcs = params["fc_layers"]
    for i, (w, b) in enumerate(fcs):
        feat = jnp.dot(feat, w, precision=hp) + b
        if i < len(fcs) - 1:
            feat = jnp.maximum(feat, 0.0)
    return feat


# ---------------------------------------------------------------------------
# Deterministic parameter init (mirrors the PyTorch __init__ shapes / ranges)
# ---------------------------------------------------------------------------
def init_params(key, dim_X, dim_y, gc=(32,), fc=(32,)):
    n_gc = [dim_X] + list(gc)
    n_fc = [gc[-1]] + list(fc) + [dim_y]

    params = {"gc_weights": [], "fc_layers": []}
    for i in range(len(gc)):
        key, k = jax.random.split(key)
        stdv = 1.0 / (n_gc[i] ** 0.5)
        params["gc_weights"].append(
            jax.random.uniform(k, (n_gc[i], n_gc[i + 1]), jnp.float32, -stdv, stdv))
    for i in range(len(n_fc) - 1):
        key, kw, kb = jax.random.split(key, 3)
        bound = 1.0 / (n_fc[i] ** 0.5)
        w = jax.random.uniform(kw, (n_fc[i], n_fc[i + 1]), jnp.float32, -bound, bound)
        b = jax.random.uniform(kb, (n_fc[i + 1],), jnp.float32, -bound, bound)
        params["fc_layers"].append((w, b))
    return params


if __name__ == "__main__":
    key = jax.random.PRNGKey(0)

    # ---- 1) small fused path (single pallas_call, n_gc == 1) ----
    N, dim_X, dim_y = 8, 16, 4
    key, kx = jax.random.split(key)
    x = jax.random.normal(kx, (N, dim_X), jnp.float32)
    key, kp = jax.random.split(key)
    params = init_params(kp, dim_X, dim_y, gc=(32,), fc=(32,))
    prep = prepare_params(params)

    out = gcn_forward(x, prep)
    jax.block_until_ready(out)
    assert out.shape == (N, dim_y) and out.dtype == jnp.float32
    ref = gcn_reference(x, params)
    assert jnp.allclose(out, ref, rtol=1e-3, atol=1e-3), \
        float(jnp.max(jnp.abs(out - ref)))

    # ---- 2) fused path with multiple gc layers (precomputed normalized A) ----
    N3, dim_X3, dim_y3 = 16, 20, 3
    key, kx3 = jax.random.split(key)
    x3 = jax.random.normal(kx3, (N3, dim_X3), jnp.float32)
    key, kp3 = jax.random.split(key)
    params3 = init_params(kp3, dim_X3, dim_y3, gc=(24, 32), fc=(16,))
    prep3 = prepare_params(params3)

    out3 = gcn_forward(x3, prep3)
    jax.block_until_ready(out3)
    assert out3.shape == (N3, dim_y3)
    ref3 = gcn_reference(x3, params3)
    assert jnp.allclose(out3, ref3, rtol=1e-3, atol=1e-3), \
        float(jnp.max(jnp.abs(out3 - ref3)))

    # ---- 3) row-tiled path (grid over row blocks, exercises row masking) ----
    N2, dim_X2, dim_y2 = 300, 16, 4
    key, kx2 = jax.random.split(key)
    x2 = jax.random.normal(kx2, (N2, dim_X2), jnp.float32)
    key, kp2 = jax.random.split(key)
    params2 = init_params(kp2, dim_X2, dim_y2, gc=(64,), fc=(32,))
    prep2 = prepare_params(params2)

    out2 = gcn_forward(x2, prep2, force_tiled=True, row_tile=128)
    jax.block_until_ready(out2)
    assert out2.shape == (N2, dim_y2)
    ref2 = gcn_reference(x2, params2)
    assert jnp.allclose(out2, ref2, rtol=1e-3, atol=2e-3), \
        float(jnp.max(jnp.abs(out2 - ref2)))

    print("KERNEL_OK")
</pallas_src>

<mosaic_0001>
module attributes {stable_mosaic.version = 11 : i64} {
  func.func @_fused_gcn_kernel(%arg0: memref<8x128xf32, #tpu.memory_space<vmem>>, %arg1: memref<128x128xf32, #tpu.memory_space<vmem>>, %arg2: memref<128x128xf32, #tpu.memory_space<vmem>>, %arg3: memref<1x128xf32, #tpu.memory_space<vmem>>, %arg4: memref<128x128xf32, #tpu.memory_space<vmem>>, %arg5: memref<1x128xf32, #tpu.memory_space<vmem>>, %arg6: memref<8x128xf32, #tpu.memory_space<vmem>>) attributes {dimension_semantics = [], scalar_prefetch = 0 : i64, scratch_operands = 0 : i64, tpu.core_type = #tpu.core_type<tc>} {
    %c0 = arith.constant 0 : index
    %c0_0 = arith.constant 0 : index
    %0 = vector.load %arg0[%c0, %c0_0] : memref<8x128xf32, #tpu.memory_space<vmem>>, vector<8x128xf32>
    %1 = arith.mulf %0, %0 : vector<8x128xf32>
    %cst = arith.constant dense<0.000000e+00> : vector<8xf32>
    %2 = vector.multi_reduction <add>, %1, %cst [1] : vector<8x128xf32> to vector<8xf32>
    %3 = vector.shape_cast %2 : vector<8xf32> to vector<8x1xf32>
    %4 = arith.mulf %0, %0 : vector<8x128xf32>
    %cst_1 = arith.constant dense<0.000000e+00> : vector<8xf32>
    %5 = vector.multi_reduction <add>, %4, %cst_1 [1] : vector<8x128xf32> to vector<8xf32>
    %6 = vector.shape_cast %5 : vector<8xf32> to vector<8x1xf32>
    %cst_2 = arith.constant dense<0.000000e+00> : vector<8x8xf32>
    %7 = tpu.matmul %0, %0, %cst_2 {dimension_numbers = #tpu.dot_dimension_numbers<[1], [1], [0], [0], [0, 0, 1, 0], [], []>} : vector<8x128xf32>, vector<8x128xf32>, vector<8x8xf32> -> vector<8x8xf32>
    %8 = tpu.transpose %6, [1, 0] : vector<8x1xf32> -> vector<1x8xf32>
    %9 = vector.broadcast %3 : vector<8x1xf32> to vector<8x8xf32>
    %10 = vector.broadcast %8 : vector<1x8xf32> to vector<8x8xf32>
    %11 = arith.addf %9, %10 : vector<8x8xf32>
    %cst_3 = arith.constant 2.000000e+00 : f32
    %12 = vector.broadcast %cst_3 : f32 to vector<8x8xf32>
    %13 = arith.mulf %12, %7 : vector<8x8xf32>
    %14 = arith.subf %11, %13 : vector<8x8xf32>
    %cst_4 = arith.constant 0.000000e+00 : f32
    %15 = vector.broadcast %cst_4 : f32 to vector<8x8xf32>
    %16 = arith.maximumf %14, %15 : vector<8x8xf32>
    %cst_5 = arith.constant -3.125000e+00 : f32
    %17 = vector.broadcast %cst_5 : f32 to vector<8x8xf32>
    %18 = arith.mulf %16, %17 : vector<8x8xf32>
    %19 = math.exp %18 : vector<8x8xf32>
    %cst_6 = arith.constant 1.000000e-01 : f32
    %20 = vector.broadcast %cst_6 : f32 to vector<8x8xf32>
    %21 = arith.cmpf olt, %19, %20 : vector<8x8xf32>
    %cst_7 = arith.constant 0.000000e+00 : f32
    %22 = vector.broadcast %cst_7 : f32 to vector<8x8xf32>
    %23 = arith.select %21, %22, %19 : vector<8x8xi1>, vector<8x8xf32>
    %cst_8 = arith.constant dense<0.000000e+00> : vector<8xf32>
    %24 = vector.multi_reduction <add>, %23, %cst_8 [1] : vector<8x8xf32> to vector<8xf32>
    %25 = vector.shape_cast %24 : vector<8xf32> to vector<8x1xf32>
    %26 = math.rsqrt %25 : vector<8x1xf32>
    %c0_9 = arith.constant 0 : index
    %c0_10 = arith.constant 0 : index
    %27 = vector.load %arg1[%c0_9, %c0_10] : memref<128x128xf32, #tpu.memory_space<vmem>>, vector<128x128xf32>
    %cst_11 = arith.constant dense<0.000000e+00> : vector<8x128xf32>
    %28 = tpu.matmul %0, %27, %cst_11 {dimension_numbers = #tpu.dot_dimension_numbers<[1], [0], [0], [1], [0, 0, 1, 1], [], []>} : vector<8x128xf32>, vector<128x128xf32>, vector<8x128xf32> -> vector<8x128xf32>
    %29 = vector.broadcast %26 : vector<8x1xf32> to vector<8x128xf32>
    %30 = arith.mulf %29, %28 : vector<8x128xf32>
    %cst_12 = arith.constant dense<0.000000e+00> : vector<8x128xf32>
    %31 = tpu.matmul %23, %30, %cst_12 {dimension_numbers = #tpu.dot_dimension_numbers<[1], [0], [0], [1], [0, 0, 1, 1], [], []>} : vector<8x8xf32>, vector<8x128xf32>, vector<8x128xf32> -> vector<8x128xf32>
    %32 = vector.broadcast %26 : vector<8x1xf32> to vector<8x128xf32>
    %33 = arith.mulf %32, %31 : vector<8x128xf32>
    %cst_13 = arith.constant 0.000000e+00 : f32
    %34 = vector.broadcast %cst_13 : f32 to vector<8x128xf32>
    %35 = arith.maximumf %33, %34 : vector<8x128xf32>
    %c0_14 = arith.constant 0 : index
    %c0_15 = arith.constant 0 : index
    %36 = vector.load %arg2[%c0_14, %c0_15] : memref<128x128xf32, #tpu.memory_space<vmem>>, vector<128x128xf32>
    %c0_16 = arith.constant 0 : index
    %c0_17 = arith.constant 0 : index
    %37 = vector.load %arg3[%c0_16, %c0_17] : memref<1x128xf32, #tpu.memory_space<vmem>>, vector<1x128xf32>
    %cst_18 = arith.constant dense<0.000000e+00> : vector<8x128xf32>
    %38 = tpu.matmul %35, %36, %cst_18 {dimension_numbers = #tpu.dot_dimension_numbers<[1], [0], [0], [1], [0, 0, 1, 1], [], []>} : vector<8x128xf32>, vector<128x128xf32>, vector<8x128xf32> -> vector<8x128xf32>
    %39 = vector.broadcast %37 : vector<1x128xf32> to vector<8x128xf32>
    %40 = arith.addf %38, %39 : vector<8x128xf32>
    %cst_19 = arith.constant 0.000000e+00 : f32
    %41 = vector.broadcast %cst_19 : f32 to vector<8x128xf32>
    %42 = arith.maximumf %40, %41 : vector<8x128xf32>
    %c0_20 = arith.constant 0 : index
    %c0_21 = arith.constant 0 : index
    %43 = vector.load %arg4[%c0_20, %c0_21] : memref<128x128xf32, #tpu.memory_space<vmem>>, vector<128x128xf32>
    %c0_22 = arith.constant 0 : index
    %c0_23 = arith.constant 0 : index
    %44 = vector.load %arg5[%c0_22, %c0_23] : memref<1x128xf32, #tpu.memory_space<vmem>>, vector<1x128xf32>
    %cst_24 = arith.constant dense<0.000000e+00> : vector<8x128xf32>
    %45 = tpu.matmul %42, %43, %cst_24 {dimension_numbers = #tpu.dot_dimension_numbers<[1], [0], [0], [1], [0, 0, 1, 1], [], []>} : vector<8x128xf32>, vector<128x128xf32>, vector<8x128xf32> -> vector<8x128xf32>
    %46 = vector.broadcast %44 : vector<1x128xf32> to vector<8x128xf32>
    %47 = arith.addf %45, %46 : vector<8x128xf32>
    %c0_25 = arith.constant 0 : index
    %c0_26 = arith.constant 0 : index
    %48 = vector.load %arg6[%c0_25, %c0_26] : memref<8x128xf32, #tpu.memory_space<vmem>>, vector<8x128xf32>
    tpu.vector_store %arg6[%c0_25, %c0_26], %47 {strides = array<i32>} : memref<8x128xf32, #tpu.memory_space<vmem>>, vector<8x128xf32>,
    return
  }
}

</mosaic_0001>

<llo_original>
// kernel: tpu_custom_call.1
$region0: #{tpu_custom_call.1}
  #allocation0 [shape = 'u32[]', space=smem, size = 0x4, offset = 0x4, fixed_abs, tag = 'smem constant byte address 0x4 - core index']
  #allocation1 [shape = 'u32[144,128]{1,0:T(1,128)}', space=vmem, size = 0x12000, scoped, tag = 'internal scratch']
  %s0 = inlined_call_operand.hbm [shape: f32[8,128], index: 0, kind: input, shape index: {}]
  %s1 = inlined_call_operand.hbm [shape: f32[128,128], index: 1, kind: input, shape index: {}]
  %s2 = inlined_call_operand.hbm [shape: f32[128,128], index: 2, kind: input, shape index: {}]
  %s3 = inlined_call_operand.vmem [shape: f32[1,128], index: 3, kind: input, shape index: {}]
  %s4 = inlined_call_operand.hbm [shape: f32[128,128], index: 4, kind: input, shape index: {}]
  %s5 = inlined_call_operand.vmem [shape: f32[1,128], index: 5, kind: input, shape index: {}]
  %s6 = inlined_call_operand.hbm [shape: f32[8,128], index: 6, kind: output, shape index: {}]
  %s7 = sld [smem:[#allocation0]]
  $region50: #{tpu_custom_call.1} parent=0
    _
  %s9 = ssub.s32 1, %s7
  %s10 = scalar_select 0, %s9, %s7
  $region1: #{tpu_custom_call.1} parent=0
    #allocation2 [shape = 'u8[4096]{0}', space=vmem, size = 0x1000, scoped, tag = 'input window, operand 0, single buffered']
    #allocation3 [shape = 's32[1]{0}', space=sflag, size = 0x4, scoped, tag = 'scoped memory for tpu_custom_call.1']
    #allocation4 [shape = 's32[1]{0}', space=sflag, size = 0x4, scoped, tag = 'scoped memory for tpu_custom_call.1']
    #allocation5 [shape = 'u8[65536]{0}', space=vmem, size = 0x10000, scoped, tag = 'input window, operand 1, single buffered']
    #allocation6 [shape = 's32[1]{0}', space=sflag, size = 0x4, scoped, tag = 'scoped memory for tpu_custom_call.1']
    #allocation7 [shape = 'u8[65536]{0}', space=vmem, size = 0x10000, scoped, tag = 'input window, operand 2, single buffered']
    #allocation8 [shape = 'u8[65536]{0}', space=vmem, size = 0x10000, scoped, tag = 'input window, operand 4, single buffered']
    #allocation9 [shape = 's32[1]{0}', space=sflag, size = 0x4, scoped, tag = 'scoped memory for tpu_custom_call.1']
    #allocation10 [shape = 'u8[4096]{0}', space=vmem, size = 0x1000, scoped, tag = 'output window, operand 0, single buffered']
    %11 = vsyncpa [#allocation3], 0
    %12 = vsyncpa [#allocation6], 0
    %13 = vsyncpa [#allocation9], 0
    %14 = vsyncpa [#allocation4], 0
    // Predicated region
    $region2: #{tpu_custom_call.1} parent=1 // pred_check
      _
    $region3: #{tpu_custom_call.1} parent=1 // pred_check_branch
      %16 = sbr.rel (0) target = $region5
    $region4: #{tpu_custom_call.1} parent=1 // pred_region
      %s18 = ssub.s32 128, 128
      %19 = vsyncadd [#allocation3], %s18
      %s21 = sshll.u32 [#allocation2], 4
      %s22 = int_to_ptr.vmem [resolvable:$true] %s21
      %24 = dma.hbm_to_vmem [thread:$0]  %s0, 128, %s22, [#allocation3]
    $region5: #{tpu_custom_call.1} parent=1 // pred_fallthru
      _
    // Predicated region
    $region6: #{tpu_custom_call.1} parent=1 // pred_check
      _
    $region7: #{tpu_custom_call.1} parent=1 // pred_check_branch
      %26 = sbr.rel (0) target = $region9
    $region8: #{tpu_custom_call.1} parent=1 // pred_region
      %s28 = ssub.s32 2048, 2048
      %29 = vsyncadd [#allocation6], %s28
      %s30 = sshll.u32 [#allocation5], 4
      %s31 = int_to_ptr.vmem [resolvable:$true] %s30
      %36 = dma.hbm_to_vmem [thread:$0]  %s1, 2048, %s31, [#allocation6], 128, 128, 8
    $region9: #{tpu_custom_call.1} parent=1 // pred_fallthru
      _
    // Predicated region
    $region10: #{tpu_custom_call.1} parent=1 // pred_check
      _
    $region11: #{tpu_custom_call.1} parent=1 // pred_check_branch
      %38 = sbr.rel (0) target = $region13
    $region12: #{tpu_custom_call.1} parent=1 // pred_region
      %s40 = ssub.s32 2048, 2048
      %41 = vsyncadd [#allocation6], %s40
      %s42 = sshll.u32 [#allocation7], 4
      %s43 = int_to_ptr.vmem [resolvable:$true] %s42
      %48 = dma.hbm_to_vmem [thread:$0]  %s2, 2048, %s43, [#allocation6], 128, 128, 8
    $region13: #{tpu_custom_call.1} parent=1 // pred_fallthru
      _
    // Predicated region
    $region14: #{tpu_custom_call.1} parent=1 // pred_check
      _
    $region15: #{tpu_custom_call.1} parent=1 // pred_check_branch
      %50 = sbr.rel (0) target = $region17
    $region16: #{tpu_custom_call.1} parent=1 // pred_region
      _
    $region17: #{tpu_custom_call.1} parent=1 // pred_fallthru
      _
    // Predicated region
    $region18: #{tpu_custom_call.1} parent=1 // pred_check
      _
    $region19: #{tpu_custom_call.1} parent=1 // pred_check_branch
      %52 = sbr.rel (0) target = $region21
    $region20: #{tpu_custom_call.1} parent=1 // pred_region
      %s54 = ssub.s32 2048, 2048
      %55 = vsyncadd [#allocation9], %s54
      %s56 = sshll.u32 [#allocation8], 4
      %s57 = int_to_ptr.vmem [resolvable:$true] %s56
      %62 = dma.hbm_to_vmem [thread:$0]  %s4, 2048, %s57, [#allocation9], 128, 128, 8
    $region21: #{tpu_custom_call.1} parent=1 // pred_fallthru
      _
    // Predicated region
    $region22: #{tpu_custom_call.1} parent=1 // pred_check
      _
    $region23: #{tpu_custom_call.1} parent=1 // pred_check_branch
      %64 = sbr.rel (0) target = $region25
    $region24: #{tpu_custom_call.1} parent=1 // pred_region
      _
    $region25: #{tpu_custom_call.1} parent=1 // pred_fallthru
      _
    // Predicated region
    $region26: #{tpu_custom_call.1} parent=1 // pred_check
      _
    $region27: #{tpu_custom_call.1} parent=1 // pred_check_branch
      %66 = sbr.rel (0) target = $region29
    $region28: #{tpu_custom_call.1} parent=1 // pred_region
      %67 = dma.done [#allocation3], 128
    $region29: #{tpu_custom_call.1} parent=1 // pred_fallthru
      _
    // Predicated region
    $region30: #{tpu_custom_call.1} parent=1 // pred_check
      _
    $region31: #{tpu_custom_call.1} parent=1 // pred_check_branch
      %69 = sbr.rel (0) target = $region33
    $region32: #{tpu_custom_call.1} parent=1 // pred_region
      %70 = dma.done [#allocation6], 2048
    $region33: #{tpu_custom_call.1} parent=1 // pred_fallthru
      _
    // Predicated region
    $region34: #{tpu_custom_call.1} parent=1 // pred_check
      _
    $region35: #{tpu_custom_call.1} parent=1 // pred_check_branch
      %72 = sbr.rel (0) target = $region37
    $region36: #{tpu_custom_call.1} parent=1 // pred_region
      %73 = dma.done [#allocation6], 2048
    $region37: #{tpu_custom_call.1} parent=1 // pred_fallthru
      _
    // Predicated region
    $region38: #{tpu_custom_call.1} parent=1 // pred_check
      _
    $region39: #{tpu_custom_call.1} parent=1 // pred_check_branch
      %75 = sbr.rel (0) target = $region41
    $region40: #{tpu_custom_call.1} parent=1 // pred_region
      %76 = dma.done [#allocation9], 2048
    $region41: #{tpu_custom_call.1} parent=1 // pred_fallthru
      _
    %v77 = vld [vmem:[#allocation2] sm:$0xff]
    %v78 = vmul.f32 %v77, %v77
    %79 = vadd.xlane.f32.xlu0 %v78
    %v80 = vpop.xlane.xlu0 %79
    %81 = vmatprep.subr.mxu0 0.0
    %82 = vmatpush1.xpose.msra.mxu0 %v77
    %83 = vmatprep.subr.mxu0 0.0
    %84 = vmatpush1.xpose.msra.mxu0 0.0
    %85 = vmatprep.subr.mxu0 0.0
    %86 = vmatpush1.xpose.msra.mxu0 0.0
    %87 = vmatprep.subr.mxu0 0.0
    %88 = vmatpush1.xpose.msra.mxu0 0.0
    %89 = vmatprep.subr.mxu0 0.0
    %90 = vmatpush1.xpose.msra.mxu0 0.0
    %91 = vmatprep.subr.mxu0 0.0
    %92 = vmatpush1.xpose.msra.mxu0 0.0
    %93 = vmatprep.subr.mxu0 0.0
    %94 = vmatpush1.xpose.msra.mxu0 0.0
    %95 = vmatprep.subr.mxu0 0.0
    %96 = vmatpush1.xpose.msra.mxu0 0.0
    %97 = vmatprep.subr.mxu0 0.0
    %98 = vmatpush1.xpose.msra.mxu0 0.0
    %99 = vmatprep.subr.mxu0 0.0
    %100 = vmatpush1.xpose.msra.mxu0 0.0
    %101 = vmatprep.subr.mxu0 0.0
    %102 = vmatpush1.xpose.msra.mxu0 0.0
    %103 = vmatprep.subr.mxu0 0.0
    %104 = vmatpush1.xpose.msra.mxu0 0.0
    %105 = vmatprep.subr.mxu0 0.0
    %106 = vmatpush1.xpose.msra.mxu0 0.0
    %107 = vmatprep.subr.mxu0 0.0
    %108 = vmatpush1.xpose.msra.mxu0 0.0
    %109 = vmatprep.subr.mxu0 0.0
    %110 = vmatpush1.xpose.msra.mxu0 0.0
    %111 = vmatprep.subr.mxu0 0.0
    %112 = vmatpush1.xpose.msra.mxu0 0.0
    %113 = vmatprep.subr.mxu0 0.0
    %114 = vmatpush1.xpose.msra.mxu0 0.0
    %115 = vmatprep.subr.mxu0 0.0
    %116 = vmatpush1.xpose.msra.mxu0 0.0
    %117 = vmatprep.subr.mxu0 0.0
    %118 = vmatpush1.xpose.msra.mxu0 0.0
    %119 = vmatprep.subr.mxu0 0.0
    %120 = vmatpush1.xpose.msra.mxu0 0.0
    %121 = vmatprep.subr.mxu0 0.0
    %122 = vmatpush1.xpose.msra.mxu0 0.0
    %123 = vmatprep.subr.mxu0 0.0
    %124 = vmatpush1.xpose.msra.mxu0 0.0
    %125 = vmatprep.subr.mxu0 0.0
    %126 = vmatpush1.xpose.msra.mxu0 0.0
    %127 = vmatprep.subr.mxu0 0.0
    %128 = vmatpush1.xpose.msra.mxu0 0.0
    %129 = vmatprep.subr.mxu0 0.0
    %130 = vmatpush1.xpose.msra.mxu0 0.0
    %131 = vmatprep.subr.mxu0 0.0
    %132 = vmatpush1.xpose.msra.mxu0 0.0
    %133 = vmatprep.subr.mxu0 0.0
    %134 = vmatpush1.xpose.msra.mxu0 0.0
    %135 = vmatprep.subr.mxu0 0.0
    %136 = vmatpush1.xpose.msra.mxu0 0.0
    %137 = vmatprep.subr.mxu0 0.0
    %138 = vmatpush1.xpose.msra.mxu0 0.0
    %139 = vmatprep.subr.mxu0 0.0
    %140 = vmatpush1.xpose.msra.mxu0 0.0
    %141 = vmatprep.subr.mxu0 0.0
    %142 = vmatpush1.xpose.msra.mxu0 0.0
    %143 = vmatprep.subr.mxu0 0.0
    %144 = vmatpush1.xpose.msra.mxu0 0.0
    %145 = vmatprep.mubr.f32.mxu0 0.0
    %146 = vmatmul.mubr.f32.gmra.mrb[0].mxu0 %v77
    %v147 = vpop.f32.mrb[0].mxu0
    %v148 = vadd.f32 0.0, %v147
    %v149 = vpop.f32.mrb[0].mxu0
    %150 = vdwg.mxu0
    %151 = vxpose.xlu0.b32.start [1/16] %v80, 128
    %152 = vxpose.xlu0.b32.cont [2/16] 0.0, 128
    %153 = vxpose.xlu0.b32.cont [3/16] 0.0, 128
    %154 = vxpose.xlu0.b32.cont [4/16] 0.0, 128
    %155 = vxpose.xlu0.b32.cont [5/16] 0.0, 128
    %156 = vxpose.xlu0.b32.cont [6/16] 0.0, 128
    %157 = vxpose.xlu0.b32.cont [7/16] 0.0, 128
    %158 = vxpose.xlu0.b32.cont [8/16] 0.0, 128
    %159 = vxpose.xlu0.b32.cont [9/16] 0.0, 128
    %160 = vxpose.xlu0.b32.cont [10/16] 0.0, 128
    %161 = vxpose.xlu0.b32.cont [11/16] 0.0, 128
    %162 = vxpose.xlu0.b32.cont [12/16] 0.0, 128
    %163 = vxpose.xlu0.b32.cont [13/16] 0.0, 128
    %164 = vxpose.xlu0.b32.cont [14/16] 0.0, 128
    %165 = vxpose.xlu0.b32.cont [15/16] 0.0, 128
    %166 = vxpose.xlu0.b32.end [16/16] 0.0, 128
    %v167 = vpop.trf.xlu0
    %v168 = vpop.trf.xlu0
    %v169 = vpop.trf.xlu0
    %v170 = vpop.trf.xlu0
    %v171 = vpop.trf.xlu0
    %v172 = vpop.trf.xlu0
    %v173 = vpop.trf.xlu0
    %v174 = vpop.trf.xlu0
    %v175 = vpop.trf.xlu0
    %v176 = vpop.trf.xlu0
    %v177 = vpop.trf.xlu0
    %v178 = vpop.trf.xlu0
    %v179 = vpop.trf.xlu0
    %v180 = vpop.trf.xlu0
    %v181 = vpop.trf.xlu0
    %v182 = vpop.trf.xlu0
    %v183 = vlaneseq
    %v184 = vshrl.u32 %v183, 7
    %v185 = vsub.s32 0, %v184
    %v186 = vrot.slane %v167, %v185
    %v187 = vadd.f32 %v80, %v186
    %v188 = vmul.f32 %v148, 2.0
    %v189 = vsub.f32 %v187, %v188
    %v190 = vmax.f32 %v189, 0.0
    %v191 = vmul.f32 %v190, -3.125
    %v192 = vmul.f32 %v191, 1.442695
    %v193 = vpow.pop %v192
    %vm194 = vcmp.lt.f32.partialorder %v193, 0.1
    %v195 = vsel %vm194, 0.0, %v193
    %vm196 = vcmask 64512
    %v197 = vsel %vm196, %v195, 0.0
    %198 = vadd.xlane.f32.xlu0 %v197
    %v199 = vpop.xlane.xlu0 %198
    %v200 = vrsqrt.pop %v199
    %v201 = vld [vmem:[#allocation5] sm:$0xff]
    %v202 = vld [vmem:[#allocation5 + $0x8] sm:$0xff]
    %v203 = vld [vmem:[#allocation5 + $0x10] sm:$0xff]
    %v204 = vld [vmem:[#allocation5 + $0x18] sm:$0xff]
    %v205 = vld [vmem:[#allocation5 + $0x20] sm:$0xff]
    %v206 = vld [vmem:[#allocation5 + $0x28] sm:$0xff]
    %v207 = vld [vmem:[#allocation5 + $0x30] sm:$0xff]
    %v208 = vld [vmem:[#allocation5 + $0x38] sm:$0xff]
    %v209 = vld [vmem:[#allocation5 + $0x40] sm:$0xff]
    %v210 = vld [vmem:[#allocation5 + $0x48] sm:$0xff]
    %v211 = vld [vmem:[#allocation5 + $0x50] sm:$0xff]
    %v212 = vld [vmem:[#allocation5 + $0x58] sm:$0xff]
    %v213 = vld [vmem:[#allocation5 + $0x60] sm:$0xff]
    %v214 = vld [vmem:[#allocation5 + $0x68] sm:$0xff]
    %v215 = vld [vmem:[#allocation5 + $0x70] sm:$0xff]
    %v216 = vld [vmem:[#allocation5 + $0x78] sm:$0xff]
    %217 = vmatprep.subr.mxu0 0.0
    %218 = vmatpush1.msra.mxu0 %v201
    %219 = vmatprep.subr.mxu0 0.0
    %220 = vmatpush1.msra.mxu0 %v202
    %221 = vmatprep.subr.mxu0 0.0
    %222 = vmatpush1.msra.mxu0 %v203
    %223 = vmatprep.subr.mxu0 0.0
    %224 = vmatpush1.msra.mxu0 %v204
    %225 = vmatprep.subr.mxu0 0.0
    %226 = vmatpush1.msra.mxu0 %v205
    %227 = vmatprep.subr.mxu0 0.0
    %228 = vmatpush1.msra.mxu0 %v206
    %229 = vmatprep.subr.mxu0 0.0
    %230 = vmatpush1.msra.mxu0 %v207
    %231 = vmatprep.subr.mxu0 0.0
    %232 = vmatpush1.msra.mxu0 %v208
    %233 = vmatprep.subr.mxu0 0.0
    %234 = vmatpush1.msra.mxu0 %v209
    %235 = vmatprep.subr.mxu0 0.0
    %236 = vmatpush1.msra.mxu0 %v210
    %237 = vmatprep.subr.mxu0 0.0
    %238 = vmatpush1.msra.mxu0 %v211
    %239 = vmatprep.subr.mxu0 0.0
    %240 = vmatpush1.msra.mxu0 %v212
    %241 = vmatprep.subr.mxu0 0.0
    %242 = vmatpush1.msra.mxu0 %v213
    %243 = vmatprep.subr.mxu0 0.0
    %244 = vmatpush1.msra.mxu0 %v214
    %245 = vmatprep.subr.mxu0 0.0
    %246 = vmatpush1.msra.mxu0 %v215
    %247 = vmatprep.subr.mxu0 0.0
    %248 = vmatpush1.msra.mxu0 %v216
    %249 = vmatprep.subr.mxu0 0.0
    %250 = vmatpush1.msra.mxu0 0.0
    %251 = vmatprep.subr.mxu0 0.0
    %252 = vmatpush1.msra.mxu0 0.0
    %253 = vmatprep.subr.mxu0 0.0
    %254 = vmatpush1.msra.mxu0 0.0
    %255 = vmatprep.subr.mxu0 0.0
    %256 = vmatpush1.msra.mxu0 0.0
    %257 = vmatprep.subr.mxu0 0.0
    %258 = vmatpush1.msra.mxu0 0.0
    %259 = vmatprep.subr.mxu0 0.0
    %260 = vmatpush1.msra.mxu0 0.0
    %261 = vmatprep.subr.mxu0 0.0
    %262 = vmatpush1.msra.mxu0 0.0
    %263 = vmatprep.subr.mxu0 0.0
    %264 = vmatpush1.msra.mxu0 0.0
    %265 = vmatprep.subr.mxu0 0.0
    %266 = vmatpush1.msra.mxu0 0.0
    %267 = vmatprep.subr.mxu0 0.0
    %268 = vmatpush1.msra.mxu0 0.0
    %269 = vmatprep.subr.mxu0 0.0
    %270 = vmatpush1.msra.mxu0 0.0
    %271 = vmatprep.subr.mxu0 0.0
    %272 = vmatpush1.msra.mxu0 0.0
    %273 = vmatprep.subr.mxu0 0.0
    %274 = vmatpush1.msra.mxu0 0.0
    %275 = vmatprep.subr.mxu0 0.0
    %276 = vmatpush1.msra.mxu0 0.0
    %277 = vmatprep.subr.mxu0 0.0
    %278 = vmatpush1.msra.mxu0 0.0
    %279 = vmatprep.subr.mxu0 0.0
    %280 = vmatpush1.msra.mxu0 0.0
    %281 = vmatprep.mubr.f32.mxu0 0.0
    %282 = vmatmul.mubr.f32.gmra.mrb[0].mxu0 %v77
    %v283 = vpop.f32.mrb[0].mxu0
    %v284 = vadd.f32 0.0, %v283
    %v285 = vpop.f32.mrb[0].mxu0
    %286 = vdwg.mxu0
    %v287 = vmul.f32 %v200, %v284
    %v289 = vsel %vm196, %v195, 0
    %291 = vmatprep.subr.mxu0 0.0
    %292 = vmatpush1.msra.mxu0 %v287
    %293 = vmatprep.subr.mxu0 0.0
    %294 = vmatpush1.msra.mxu0 0.0
    %295 = vmatprep.subr.mxu0 0.0
    %296 = vmatpush1.msra.mxu0 0.0
    %297 = vmatprep.subr.mxu0 0.0
    %298 = vmatpush1.msra.mxu0 0.0
    %299 = vmatprep.subr.mxu0 0.0
    %300 = vmatpush1.msra.mxu0 0.0
    %301 = vmatprep.subr.mxu0 0.0
    %302 = vmatpush1.msra.mxu0 0.0
    %303 = vmatprep.subr.mxu0 0.0
    %304 = vmatpush1.msra.mxu0 0.0
    %305 = vmatprep.subr.mxu0 0.0
    %306 = vmatpush1.msra.mxu0 0.0
    %307 = vmatprep.subr.mxu0 0.0
    %308 = vmatpush1.msra.mxu0 0.0
    %309 = vmatprep.subr.mxu0 0.0
    %310 = vmatpush1.msra.mxu0 0.0
    %311 = vmatprep.subr.mxu0 0.0
    %312 = vmatpush1.msra.mxu0 0.0
    %313 = vmatprep.subr.mxu0 0.0
    %314 = vmatpush1.msra.mxu0 0.0
    %315 = vmatprep.subr.mxu0 0.0
    %316 = vmatpush1.msra.mxu0 0.0
    %317 = vmatprep.subr.mxu0 0.0
    %318 = vmatpush1.msra.mxu0 0.0
    %319 = vmatprep.subr.mxu0 0.0
    %320 = vmatpush1.msra.mxu0 0.0
    %321 = vmatprep.subr.mxu0 0.0
    %322 = vmatpush1.msra.mxu0 0.0
    %323 = vmatprep.subr.mxu0 0.0
    %324 = vmatpush1.msra.mxu0 0.0
    %325 = vmatprep.subr.mxu0 0.0
    %326 = vmatpush1.msra.mxu0 0.0
    %327 = vmatprep.subr.mxu0 0.0
    %328 = vmatpush1.msra.mxu0 0.0
    %329 = vmatprep.subr.mxu0 0.0
    %330 = vmatpush1.msra.mxu0 0.0
    %331 = vmatprep.subr.mxu0 0.0
    %332 = vmatpush1.msra.mxu0 0.0
    %333 = vmatprep.subr.mxu0 0.0
    %334 = vmatpush1.msra.mxu0 0.0
    %335 = vmatprep.subr.mxu0 0.0
    %336 = vmatpush1.msra.mxu0 0.0
    %337 = vmatprep.subr.mxu0 0.0
    %338 = vmatpush1.msra.mxu0 0.0
    %339 = vmatprep.subr.mxu0 0.0
    %340 = vmatpush1.msra.mxu0 0.0
    %341 = vmatprep.subr.mxu0 0.0
    %342 = vmatpush1.msra.mxu0 0.0
    %343 = vmatprep.subr.mxu0 0.0
    %344 = vmatpush1.msra.mxu0 0.0
    %345 = vmatprep.subr.mxu0 0.0
    %346 = vmatpush1.msra.mxu0 0.0
    %347 = vmatprep.subr.mxu0 0.0
    %348 = vmatpush1.msra.mxu0 0.0
    %349 = vmatprep.subr.mxu0 0.0
    %350 = vmatpush1.msra.mxu0 0.0
    %351 = vmatprep.subr.mxu0 0.0
    %352 = vmatpush1.msra.mxu0 0.0
    %353 = vmatprep.subr.mxu0 0.0
    %354 = vmatpush1.msra.mxu0 0.0
    %355 = vmatprep.mubr.f32.mxu0 0.0
    %356 = vmatmul.mubr.f32.gmra.mrb[0].mxu0 %v289
    %v357 = vpop.f32.mrb[0].mxu0
    %v358 = vadd.f32 0.0, %v357
    %v359 = vpop.f32.mrb[0].mxu0
    %360 = vdwg.mxu0
    %v361 = vmul.f32 %v200, %v358
    %v362 = vmax.f32 %v361, 0.0
    %v363 = vld [vmem:[#allocation7] sm:$0xff]
    %v364 = vld [vmem:[#allocation7 + $0x8] sm:$0xff]
    %v365 = vld [vmem:[#allocation7 + $0x10] sm:$0xff]
    %v366 = vld [vmem:[#allocation7 + $0x18] sm:$0xff]
    %v367 = vld [vmem:[#allocation7 + $0x20] sm:$0xff]
    %v368 = vld [vmem:[#allocation7 + $0x28] sm:$0xff]
    %v369 = vld [vmem:[#allocation7 + $0x30] sm:$0xff]
    %v370 = vld [vmem:[#allocation7 + $0x38] sm:$0xff]
    %v371 = vld [vmem:[#allocation7 + $0x40] sm:$0xff]
    %v372 = vld [vmem:[#allocation7 + $0x48] sm:$0xff]
    %v373 = vld [vmem:[#allocation7 + $0x50] sm:$0xff]
    %v374 = vld [vmem:[#allocation7 + $0x58] sm:$0xff]
    %v375 = vld [vmem:[#allocation7 + $0x60] sm:$0xff]
    %v376 = vld [vmem:[#allocation7 + $0x68] sm:$0xff]
    %v377 = vld [vmem:[#allocation7 + $0x70] sm:$0xff]
    %v378 = vld [vmem:[#allocation7 + $0x78] sm:$0xff]
    %v379 = vld [vmem:[%s3] sm:$0x1]
    %v381 = vlaneseq
    %v382 = vshrl.u32 %v381, 7
    %v383 = vsub.s32 0, %v382
    %v384 = vrot.slane %v379, %v383
    %386 = vmatprep.subr.mxu0 0.0
    %387 = vmatpush1.msra.mxu0 %v363
    %388 = vmatprep.subr.mxu0 0.0
    %389 = vmatpush1.msra.mxu0 %v364
    %390 = vmatprep.subr.mxu0 0.0
    %391 = vmatpush1.msra.mxu0 %v365
    %392 = vmatprep.subr.mxu0 0.0
    %393 = vmatpush1.msra.mxu0 %v366
    %394 = vmatprep.subr.mxu0 0.0
    %395 = vmatpush1.msra.mxu0 %v367
    %396 = vmatprep.subr.mxu0 0.0
    %397 = vmatpush1.msra.mxu0 %v368
    %398 = vmatprep.subr.mxu0 0.0
    %399 = vmatpush1.msra.mxu0 %v369
    %400 = vmatprep.subr.mxu0 0.0
    %401 = vmatpush1.msra.mxu0 %v370
    %402 = vmatprep.subr.mxu0 0.0
    %403 = vmatpush1.msra.mxu0 %v371
    %404 = vmatprep.subr.mxu0 0.0
    %405 = vmatpush1.msra.mxu0 %v372
    %406 = vmatprep.subr.mxu0 0.0
    %407 = vmatpush1.msra.mxu0 %v373
    %408 = vmatprep.subr.mxu0 0.0
    %409 = vmatpush1.msra.mxu0 %v374
    %410 = vmatprep.subr.mxu0 0.0
    %411 = vmatpush1.msra.mxu0 %v375
    %412 = vmatprep.subr.mxu0 0.0
    %413 = vmatpush1.msra.mxu0 %v376
    %414 = vmatprep.subr.mxu0 0.0
    %415 = vmatpush1.msra.mxu0 %v377
    %416 = vmatprep.subr.mxu0 0.0
    %417 = vmatpush1.msra.mxu0 %v378
    %418 = vmatprep.subr.mxu0 0.0
    %419 = vmatpush1.msra.mxu0 0.0
    %420 = vmatprep.subr.mxu0 0.0
    %421 = vmatpush1.msra.mxu0 0.0
    %422 = vmatprep.subr.mxu0 0.0
    %423 = vmatpush1.msra.mxu0 0.0
    %424 = vmatprep.subr.mxu0 0.0
    %425 = vmatpush1.msra.mxu0 0.0
    %426 = vmatprep.subr.mxu0 0.0
    %427 = vmatpush1.msra.mxu0 0.0
    %428 = vmatprep.subr.mxu0 0.0
    %429 = vmatpush1.msra.mxu0 0.0
    %430 = vmatprep.subr.mxu0 0.0
    %431 = vmatpush1.msra.mxu0 0.0
    %432 = vmatprep.subr.mxu0 0.0
    %433 = vmatpush1.msra.mxu0 0.0
    %434 = vmatprep.subr.mxu0 0.0
    %435 = vmatpush1.msra.mxu0 0.0
    %436 = vmatprep.subr.mxu0 0.0
    %437 = vmatpush1.msra.mxu0 0.0
    %438 = vmatprep.subr.mxu0 0.0
    %439 = vmatpush1.msra.mxu0 0.0
    %440 = vmatprep.subr.mxu0 0.0
    %441 = vmatpush1.msra.mxu0 0.0
    %442 = vmatprep.subr.mxu0 0.0
    %443 = vmatpush1.msra.mxu0 0.0
    %444 = vmatprep.subr.mxu0 0.0
    %445 = vmatpush1.msra.mxu0 0.0
    %446 = vmatprep.subr.mxu0 0.0
    %447 = vmatpush1.msra.mxu0 0.0
    %448 = vmatprep.subr.mxu0 0.0
    %449 = vmatpush1.msra.mxu0 0.0
    %450 = vmatprep.mubr.f32.mxu0 0.0
    %451 = vmatmul.mubr.f32.gmra.mrb[0].mxu0 %v362
    %v452 = vpop.f32.mrb[0].mxu0
    %v453 = vadd.f32 %v384, %v452
    %v454 = vpop.f32.mrb[0].mxu0
    %455 = vdwg.mxu0
    %v456 = vmax.f32 %v453, 0.0
    %v457 = vld [vmem:[#allocation8] sm:$0xff]
    %v458 = vld [vmem:[#allocation8 + $0x8] sm:$0xff]
    %v459 = vld [vmem:[#allocation8 + $0x10] sm:$0xff]
    %v460 = vld [vmem:[#allocation8 + $0x18] sm:$0xff]
    %v461 = vld [vmem:[#allocation8 + $0x20] sm:$0xff]
    %v462 = vld [vmem:[#allocation8 + $0x28] sm:$0xff]
    %v463 = vld [vmem:[#allocation8 + $0x30] sm:$0xff]
    %v464 = vld [vmem:[#allocation8 + $0x38] sm:$0xff]
    %v465 = vld [vmem:[#allocation8 + $0x40] sm:$0xff]
    %v466 = vld [vmem:[#allocation8 + $0x48] sm:$0xff]
    %v467 = vld [vmem:[#allocation8 + $0x50] sm:$0xff]
    %v468 = vld [vmem:[#allocation8 + $0x58] sm:$0xff]
    %v469 = vld [vmem:[#allocation8 + $0x60] sm:$0xff]
    %v470 = vld [vmem:[#allocation8 + $0x68] sm:$0xff]
    %v471 = vld [vmem:[#allocation8 + $0x70] sm:$0xff]
    %v472 = vld [vmem:[#allocation8 + $0x78] sm:$0xff]
    %v473 = vld [vmem:[%s5] sm:$0x1]
    %v475 = vlaneseq
    %v476 = vshrl.u32 %v475, 7
    %v477 = vsub.s32 0, %v476
    %v478 = vrot.slane %v473, %v477
    %480 = vmatprep.subr.mxu0 0.0
    %481 = vmatpush1.msra.mxu0 %v457
    %482 = vmatprep.subr.mxu0 0.0
    %483 = vmatpush1.msra.mxu0 %v458
    %484 = vmatprep.subr.mxu0 0.0
    %485 = vmatpush1.msra.mxu0 %v459
    %486 = vmatprep.subr.mxu0 0.0
    %487 = vmatpush1.msra.mxu0 %v460
    %488 = vmatprep.subr.mxu0 0.0
    %489 = vmatpush1.msra.mxu0 %v461
    %490 = vmatprep.subr.mxu0 0.0
    %491 = vmatpush1.msra.mxu0 %v462
    %492 = vmatprep.subr.mxu0 0.0
    %493 = vmatpush1.msra.mxu0 %v463
    %494 = vmatprep.subr.mxu0 0.0
    %495 = vmatpush1.msra.mxu0 %v464
    %496 = vmatprep.subr.mxu0 0.0
    %497 = vmatpush1.msra.mxu0 %v465
    %498 = vmatprep.subr.mxu0 0.0
    %499 = vmatpush1.msra.mxu0 %v466
    %500 = vmatprep.subr.mxu0 0.0
    %501 = vmatpush1.msra.mxu0 %v467
    %502 = vmatprep.subr.mxu0 0.0
    %503 = vmatpush1.msra.mxu0 %v468
    %504 = vmatprep.subr.mxu0 0.0
    %505 = vmatpush1.msra.mxu0 %v469
    %506 = vmatprep.subr.mxu0 0.0
    %507 = vmatpush1.msra.mxu0 %v470
    %508 = vmatprep.subr.mxu0 0.0
    %509 = vmatpush1.msra.mxu0 %v471
    %510 = vmatprep.subr.mxu0 0.0
    %511 = vmatpush1.msra.mxu0 %v472
    %512 = vmatprep.subr.mxu0 0.0
    %513 = vmatpush1.msra.mxu0 0.0
    %514 = vmatprep.subr.mxu0 0.0
    %515 = vmatpush1.msra.mxu0 0.0
    %516 = vmatprep.subr.mxu0 0.0
    %517 = vmatpush1.msra.mxu0 0.0
    %518 = vmatprep.subr.mxu0 0.0
    %519 = vmatpush1.msra.mxu0 0.0
    %520 = vmatprep.subr.mxu0 0.0
    %521 = vmatpush1.msra.mxu0 0.0
    %522 = vmatprep.subr.mxu0 0.0
    %523 = vmatpush1.msra.mxu0 0.0
    %524 = vmatprep.subr.mxu0 0.0
    %525 = vmatpush1.msra.mxu0 0.0
    %526 = vmatprep.subr.mxu0 0.0
    %527 = vmatpush1.msra.mxu0 0.0
    %528 = vmatprep.subr.mxu0 0.0
    %529 = vmatpush1.msra.mxu0 0.0
    %530 = vmatprep.subr.mxu0 0.0
    %531 = vmatpush1.msra.mxu0 0.0
    %532 = vmatprep.subr.mxu0 0.0
    %533 = vmatpush1.msra.mxu0 0.0
    %534 = vmatprep.subr.mxu0 0.0
    %535 = vmatpush1.msra.mxu0 0.0
    %536 = vmatprep.subr.mxu0 0.0
    %537 = vmatpush1.msra.mxu0 0.0
    %538 = vmatprep.subr.mxu0 0.0
    %539 = vmatpush1.msra.mxu0 0.0
    %540 = vmatprep.subr.mxu0 0.0
    %541 = vmatpush1.msra.mxu0 0.0
    %542 = vmatprep.subr.mxu0 0.0
    %543 = vmatpush1.msra.mxu0 0.0
    %544 = vmatprep.mubr.f32.mxu0 0.0
    %545 = vmatmul.mubr.f32.gmra.mrb[0].mxu0 %v456
    %v546 = vpop.f32.mrb[0].mxu0
    %v547 = vadd.f32 %v478, %v546
    %v548 = vpop.f32.mrb[0].mxu0
    %549 = vdwg.mxu0
    %550 = vst [vmem:[#allocation10] sm:$0xff] %v547
    // Predicated region
    $region42: #{tpu_custom_call.1} parent=1 // pred_check
      _
    $region43: #{tpu_custom_call.1} parent=1 // pred_check_branch
      %552 = sbr.rel (0) target = $region45
    $region44: #{tpu_custom_call.1} parent=1 // pred_region
      %s554 = ssub.s32 128, 128
      %555 = vsyncadd [#allocation4], %s554
      %s557 = sshll.u32 [#allocation10], 4
      %s558 = int_to_ptr.vmem [resolvable:$true] %s557
      %560 = dma.vmem_to_hbm [thread:$0]  %s558, 128, %s6, [#allocation4]
    $region45: #{tpu_custom_call.1} parent=1 // pred_fallthru
      _
    // Predicated region
    $region46: #{tpu_custom_call.1} parent=1 // pred_check
      _
    $region47: #{tpu_custom_call.1} parent=1 // pred_check_branch
      %562 = sbr.rel (0) target = $region49
    $region48: #{tpu_custom_call.1} parent=1 // pred_region
      %563 = dma.done [#allocation4], 128
    $region49: #{tpu_custom_call.1} parent=1 // pred_fallthru
      _
    %564 = vsyncpa [#allocation3], 1
    %565 = vsyncpa [#allocation6], 1
    %566 = vsyncpa [#allocation9], 1
    %567 = vsyncpa [#allocation4], 1

</llo_original>
